<compile_context>
chip_gen: v6e
topology: v6e:2x2x1
jax: 0.10.0
libtpu: 0.0.40
codegen_flags: <defaults>
</compile_context>

<pallas_src>
import math
import functools

import jax
import jax.numpy as jnp
from jax import lax
from jax.experimental import pallas as pl
from jax.experimental.pallas import tpu as pltpu


def _qkv_proj_kernel(x_ref, w_ref, q_ref, k_ref, v_ref, *,
                     num_heads, head_dim, d_out, scale):
    """Fused QKV projection for one (batch, seq-tile) block, emitted head-major."""
    x = x_ref[0]                                                    # (tile, d_in)
    qkv = jnp.dot(x, w_ref[...],
                  preferred_element_type=jnp.float32)               # (tile, 3*d_out)

    # Fold the softmax scale into Q once here (removes a VPU pass over the
    # (H, tq, tk) score tensor from every attention inner step).
    q_all = qkv[:, :d_out] * scale
    k_all = qkv[:, d_out:2 * d_out]
    v_all = qkv[:, 2 * d_out:]

    # Head-major writes: (B, H, T, hd) is produced directly by the kernel, so no
    # XLA transpose (a full extra HBM read+write of Q/K/V) is needed afterwards.
    # Static lane slices + per-head stores are layout plumbing hidden under the MXU.
    for h in range(num_heads):
        lo = h * head_dim
        hi = lo + head_dim
        q_ref[0, h] = q_all[:, lo:hi].astype(q_ref.dtype)
        k_ref[0, h] = k_all[:, lo:hi].astype(k_ref.dtype)
        v_ref[0, h] = v_all[:, lo:hi].astype(v_ref.dtype)


def _flash_attn_kernel(q_ref, k_ref, v_ref, wo_ref, bo_ref, o_ref,
                       m_sc, l_sc, acc_sc, *, tq, tk):
    """Online-softmax causal attention (heads batched) + fused out projection."""
    qi = pl.program_id(1)
    ki = pl.program_id(2)
    nk = pl.num_programs(2)

    @pl.when(ki == 0)
    def _init():
        m_sc[...] = jnp.full_like(m_sc, -jnp.inf)
        l_sc[...] = jnp.zeros_like(l_sc)
        acc_sc[...] = jnp.zeros_like(acc_sc)

    q_start = qi * tq
    k_start = ki * tk

    def _accumulate(apply_mask):
        q = q_ref[0]                                                # (H, tq, hd) -- pre-scaled
        k = k_ref[0]                                                # (H, tk, hd)
        v = v_ref[0]                                                # (H, tk, hd)

        # All heads in one batched MXU call; contraction on the last dim of both
        # operands (no explicit transpose of k).
        s = jnp.einsum('hqd,hkd->hqk', q, k,
                       preferred_element_type=jnp.float32)          # (H, tq, tk)

        if apply_mask:
            # Only tiles that intersect the diagonal pay for the mask math.
            row = q_start + lax.broadcasted_iota(jnp.int32, (tq, tk), 0)
            col = k_start + lax.broadcasted_iota(jnp.int32, (tq, tk), 1)
            s = jnp.where((col <= row)[None, :, :], s, jnp.float32(-1e30))

        m_prev = m_sc[...]                                          # (H, tq, 1)
        m_new = jnp.maximum(m_prev, s.max(axis=-1, keepdims=True))
        alpha = jnp.exp(m_prev - m_new)
        # TODO(synk): on v6e/v7x this exp could run in bf16 (2x EUP throughput);
        # kept f32 for parity with the f32 reference and for v5e.
        p = jnp.exp(s - m_new)                                      # (H, tq, tk)

        l_sc[...] = alpha * l_sc[...] + p.sum(axis=-1, keepdims=True)
        acc_sc[...] = alpha * acc_sc[...] + jnp.einsum(
            'hqk,hkd->hqd', p.astype(v.dtype), v,
            preferred_element_type=jnp.float32)
        m_sc[...] = m_new

    # Tiles strictly below the causal diagonal: mask-free fast path.
    @pl.when(k_start + tk <= q_start + 1)
    def _step_below_diag():
        _accumulate(apply_mask=False)

    # Tiles intersecting the diagonal: apply the causal mask.
    @pl.when((k_start < q_start + tq) & (k_start + tk > q_start + 1))
    def _step_on_diag():
        _accumulate(apply_mask=True)

    # Tiles entirely above the diagonal run neither branch; their K/V index maps
    # are clamped onto the diagonal block so they also issue no DMA.

    @pl.when(ki == nk - 1)
    def _finalize():
        # Single normalize per q tile (approx=False keeps f32 parity with the
        # reference; approx=True is fine for bf16 inference).
        ctx = acc_sc[...] * pl.reciprocal(l_sc[...], approx=False)  # (H, tq, hd)
        # One batched contraction over heads instead of a per-head concatenate,
        # then a cheap add over the head axis.
        out = jnp.einsum('hqd,hdo->hqo', ctx.astype(wo_ref.dtype), wo_ref[...],
                         preferred_element_type=jnp.float32)        # (H, tq, d_out)
        out = out.sum(axis=0) + bo_ref[...]
        o_ref[0] = out.astype(o_ref.dtype)


def multi_head_attention_v2(x, wq, wk, wv, wo, bo, *, num_heads,
                            block_q=256, block_k=256):
    """Causal MHA forward: y = out_proj(softmax(QK^T/sqrt(hd), causal) V)."""
    B, T, d_in = x.shape
    d_out = wq.shape[1]
    assert d_out % num_heads == 0, "d_out must be divisible by num_heads"
    head_dim = d_out // num_heads
    dtype = x.dtype

    # 256-tiles fill the v6e/v7x 2x256^2 MXU; use 128 on v5e.
    tq = min(block_q, T)
    tk = min(block_k, T)
    assert T % tq == 0 and T % tk == 0, "T must be divisible by the q/k tile sizes"

    scale = 1.0 / math.sqrt(head_dim)

    # One concatenated QKV weight: one long MXU stream / one weight DMA stream.
    w_qkv = jnp.concatenate([wq, wk, wv], axis=1)                   # (d_in, 3*d_out)
    # Out-projection weight presented as (H, hd, d_out) so finalize contracts
    # heads in a single batched matmul (free XLA reshape, no data movement).
    wo_h = wo.reshape(num_heads, head_dim, d_out)
    bo2 = bo.reshape(1, d_out)

    # ---- Stage 1: fused QKV projection, emitted head-major ------------------
    qkv_kernel = functools.partial(
        _qkv_proj_kernel, num_heads=num_heads, head_dim=head_dim,
        d_out=d_out, scale=scale)
    hm_shape = jax.ShapeDtypeStruct((B, num_heads, T, head_dim), dtype)

    q, k, v = pl.pallas_call(
        qkv_kernel,
        out_shape=(hm_shape, hm_shape, hm_shape),
        grid=(B, T // tq),
        in_specs=[
            pl.BlockSpec((1, tq, d_in), lambda b, t: (b, t, 0)),
            # Constant-index weight block: DMA'd once, then revisited.
            # TODO(synk): for d_model >= ~2-4K keep w_qkv in HBM
            # (memory_space=pl.ANY), tile the 3*d_out axis, and budget
            # vmem_limit_bytes so the resident weights fit v7x's 64 MiB VMEM.
            pl.BlockSpec((d_in, 3 * d_out), lambda b, t: (0, 0)),
        ],
        out_specs=(
            pl.BlockSpec((1, num_heads, tq, head_dim), lambda b, t: (b, 0, t, 0)),
            pl.BlockSpec((1, num_heads, tq, head_dim), lambda b, t: (b, 0, t, 0)),
            pl.BlockSpec((1, num_heads, tq, head_dim), lambda b, t: (b, 0, t, 0)),
        ),
        compiler_params=pltpu.CompilerParams(
            dimension_semantics=("parallel", "parallel")),
    )(x, w_qkv)

    # ---- Stage 2: flash attention + fused output projection -----------------
    attn_kernel = functools.partial(_flash_attn_kernel, tq=tq, tk=tk)

    # Clamp K/V block indices for causally-skipped (upper-triangle) tiles onto
    # the diagonal block: the already-resident block is revisited, so no DMA.
    def kv_index_map(b, i, j):
        return (b, 0, jnp.minimum(j, (i * tq + tq - 1) // tk), 0)

    return pl.pallas_call(
        attn_kernel,
        out_shape=jax.ShapeDtypeStruct((B, T, d_out), dtype),
        # TODO(synk): a flattened lower-triangular schedule (PrefetchScalarGridSpec
        # with scalar-prefetched (i, j) tables) would also remove the ~0.35us
        # grid-step cost of skipped tiles; kept rectangular for simplicity.
        grid=(B, T // tq, T // tk),
        in_specs=[
            pl.BlockSpec((1, num_heads, tq, head_dim), lambda b, i, j: (b, 0, i, 0)),
            pl.BlockSpec((1, num_heads, tk, head_dim), kv_index_map),
            pl.BlockSpec((1, num_heads, tk, head_dim), kv_index_map),
            pl.BlockSpec((num_heads, head_dim, d_out), lambda b, i, j: (0, 0, 0)),
            pl.BlockSpec((1, d_out), lambda b, i, j: (0, 0)),
        ],
        out_specs=pl.BlockSpec((1, tq, d_out), lambda b, i, j: (b, i, 0)),
        scratch_shapes=[
            pltpu.VMEM((num_heads, tq, 1), jnp.float32),            # running max m
            pltpu.VMEM((num_heads, tq, 1), jnp.float32),            # running denom l
            pltpu.VMEM((num_heads, tq, head_dim), jnp.float32),     # f32 accumulator
        ],
        compiler_params=pltpu.CompilerParams(
            dimension_semantics=("parallel", "parallel", "arbitrary")),
    )(q, k, v, wo_h, bo2)


def _reference(x, wq, wk, wv, wo, bo, *, num_heads):
    B, T, d_in = x.shape
    d_out = wq.shape[1]
    hd = d_out // num_heads
    q = (x @ wq).reshape(B, T, num_heads, hd).transpose(0, 2, 1, 3)
    k = (x @ wk).reshape(B, T, num_heads, hd).transpose(0, 2, 1, 3)
    v = (x @ wv).reshape(B, T, num_heads, hd).transpose(0, 2, 1, 3)
    s = jnp.einsum('bhqd,bhkd->bhqk', q, k) / math.sqrt(hd)
    mask = jnp.tril(jnp.ones((T, T), dtype=bool))
    s = jnp.where(mask, s, -1e30)
    p = jax.nn.softmax(s, axis=-1)
    ctx = jnp.einsum('bhqk,bhkd->bhqd', p, v).transpose(0, 2, 1, 3).reshape(B, T, d_out)
    return ctx @ wo + bo.reshape(1, d_out)


if __name__ == "__main__":
    # Small shapes consistent with the module: d_in=16, d_out=32, heads=4,
    # context_length (T) = 8, batch = 2, dropout = 0.0.
    B, T, d_in, d_out, num_heads = 2, 8, 16, 32, 4

    key = jax.random.PRNGKey(0)
    kx, kq, kk, kv, ko, kb = jax.random.split(key, 6)

    # Deterministic param init (PyTorch Linear-style uniform bounds).
    b_in = 1.0 / math.sqrt(d_in)
    b_o = 1.0 / math.sqrt(d_out)
    x = jax.random.normal(kx, (B, T, d_in), dtype=jnp.float32)
    wq = jax.random.uniform(kq, (d_in, d_out), jnp.float32, -b_in, b_in)
    wk = jax.random.uniform(kk, (d_in, d_out), jnp.float32, -b_in, b_in)
    wv = jax.random.uniform(kv, (d_in, d_out), jnp.float32, -b_in, b_in)
    wo = jax.random.uniform(ko, (d_out, d_out), jnp.float32, -b_o, b_o)
    bo = jax.random.uniform(kb, (d_out,), jnp.float32, -b_o, b_o)

    out = multi_head_attention_v2(x, wq, wk, wv, wo, bo, num_heads=num_heads)
    out = jax.block_until_ready(out)

    ref = _reference(x, wq, wk, wv, wo, bo, num_heads=num_heads)
    assert out.shape == (B, T, d_out)
    assert jnp.allclose(out, ref, atol=2e-3, rtol=2e-3), "mismatch vs reference"

    print("KERNEL_OK")
</pallas_src>

<mosaic_0001>
module attributes {stable_mosaic.version = 11 : i64} {
  func.func @_qkv_proj_kernel(%arg0: i32, %arg1: i32, %arg2: memref<1x8x16xf32, #tpu.memory_space<vmem>>, %arg3: memref<16x96xf32, #tpu.memory_space<vmem>>, %arg4: memref<1x4x8x8xf32, #tpu.memory_space<vmem>>, %arg5: memref<1x4x8x8xf32, #tpu.memory_space<vmem>>, %arg6: memref<1x4x8x8xf32, #tpu.memory_space<vmem>>) attributes {dimension_semantics = [#tpu.dimension_semantics<parallel>, #tpu.dimension_semantics<parallel>], iteration_bounds = array<i64: 2, 1>, scalar_prefetch = 0 : i64, scratch_operands = 0 : i64, tpu.core_type = #tpu.core_type<tc>, window_params = [{transform_indices = @transform_0, window_bounds = array<i64: 1, 8, 16>}, {pipeline_mode = #tpu.pipeline_mode<synchronous>, transform_indices = @transform_1, window_bounds = array<i64: 16, 96>}, {transform_indices = @transform_2, window_bounds = array<i64: 1, 4, 8, 8>}, {transform_indices = @transform_3, window_bounds = array<i64: 1, 4, 8, 8>}, {transform_indices = @transform_4, window_bounds = array<i64: 1, 4, 8, 8>}]} {
    %c0 = arith.constant 0 : index
    %c0_0 = arith.constant 0 : index
    %c0_1 = arith.constant 0 : index
    %0 = vector.load %arg2[%c0, %c0_0, %c0_1] : memref<1x8x16xf32, #tpu.memory_space<vmem>>, vector<1x8x16xf32>
    %1 = vector.shape_cast %0 : vector<1x8x16xf32> to vector<8x16xf32>
    %c0_2 = arith.constant 0 : index
    %c0_3 = arith.constant 0 : index
    %2 = vector.load %arg3[%c0_2, %c0_3] : memref<16x96xf32, #tpu.memory_space<vmem>>, vector<16x96xf32>
    %cst = arith.constant dense<0.000000e+00> : vector<8x96xf32>
    %3 = tpu.matmul %1, %2, %cst {dimension_numbers = #tpu.dot_dimension_numbers<[1], [0], [0], [1], [0, 0, 1, 1], [], []>} : vector<8x16xf32>, vector<16x96xf32>, vector<8x96xf32> -> vector<8x96xf32>
    %4 = vector.extract_strided_slice %3 {offsets = [0, 0], sizes = [8, 32], strides = [1, 1]} : vector<8x96xf32> to vector<8x32xf32>
    %cst_4 = arith.constant 0.353553385 : f32
    %5 = vector.broadcast %cst_4 : f32 to vector<8x32xf32>
    %6 = arith.mulf %4, %5 : vector<8x32xf32>
    %7 = vector.extract_strided_slice %3 {offsets = [0, 32], sizes = [8, 32], strides = [1, 1]} : vector<8x96xf32> to vector<8x32xf32>
    %8 = vector.extract_strided_slice %3 {offsets = [0, 64], sizes = [8, 32], strides = [1, 1]} : vector<8x96xf32> to vector<8x32xf32>
    %9 = vector.extract_strided_slice %6 {offsets = [0, 0], sizes = [8, 8], strides = [1, 1]} : vector<8x32xf32> to vector<8x8xf32>
    %c0_5 = arith.constant 0 : index
    %c0_6 = arith.constant 0 : index
    %c0_7 = arith.constant 0 : index
    %c0_8 = arith.constant 0 : index
    %10 = vector.load %arg4[%c0_5, %c0_6, %c0_7, %c0_8] : memref<1x4x8x8xf32, #tpu.memory_space<vmem>>, vector<1x1x8x8xf32>
    %11 = vector.shape_cast %10 : vector<1x1x8x8xf32> to vector<8x8xf32>
    %12 = vector.shape_cast %9 : vector<8x8xf32> to vector<1x1x8x8xf32>
    tpu.vector_store %arg4[%c0_5, %c0_6, %c0_7, %c0_8], %12 {strides = array<i32>} : memref<1x4x8x8xf32, #tpu.memory_space<vmem>>, vector<1x1x8x8xf32>,
    %13 = vector.extract_strided_slice %7 {offsets = [0, 0], sizes = [8, 8], strides = [1, 1]} : vector<8x32xf32> to vector<8x8xf32>
    %c0_9 = arith.constant 0 : index
    %c0_10 = arith.constant 0 : index
    %c0_11 = arith.constant 0 : index
    %c0_12 = arith.constant 0 : index
    %14 = vector.load %arg5[%c0_9, %c0_10, %c0_11, %c0_12] : memref<1x4x8x8xf32, #tpu.memory_space<vmem>>, vector<1x1x8x8xf32>
    %15 = vector.shape_cast %14 : vector<1x1x8x8xf32> to vector<8x8xf32>
    %16 = vector.shape_cast %13 : vector<8x8xf32> to vector<1x1x8x8xf32>
    tpu.vector_store %arg5[%c0_9, %c0_10, %c0_11, %c0_12], %16 {strides = array<i32>} : memref<1x4x8x8xf32, #tpu.memory_space<vmem>>, vector<1x1x8x8xf32>,
    %17 = vector.extract_strided_slice %8 {offsets = [0, 0], sizes = [8, 8], strides = [1, 1]} : vector<8x32xf32> to vector<8x8xf32>
    %c0_13 = arith.constant 0 : index
    %c0_14 = arith.constant 0 : index
    %c0_15 = arith.constant 0 : index
    %c0_16 = arith.constant 0 : index
    %18 = vector.load %arg6[%c0_13, %c0_14, %c0_15, %c0_16] : memref<1x4x8x8xf32, #tpu.memory_space<vmem>>, vector<1x1x8x8xf32>
    %19 = vector.shape_cast %18 : vector<1x1x8x8xf32> to vector<8x8xf32>
    %20 = vector.shape_cast %17 : vector<8x8xf32> to vector<1x1x8x8xf32>
    tpu.vector_store %arg6[%c0_13, %c0_14, %c0_15, %c0_16], %20 {strides = array<i32>} : memref<1x4x8x8xf32, #tpu.memory_space<vmem>>, vector<1x1x8x8xf32>,
    %21 = vector.extract_strided_slice %6 {offsets = [0, 8], sizes = [8, 8], strides = [1, 1]} : vector<8x32xf32> to vector<8x8xf32>
    %c0_17 = arith.constant 0 : index
    %c1 = arith.constant 1 : index
    %c0_18 = arith.constant 0 : index
    %c0_19 = arith.constant 0 : index
    %22 = vector.load %arg4[%c0_17, %c1, %c0_18, %c0_19] : memref<1x4x8x8xf32, #tpu.memory_space<vmem>>, vector<1x1x8x8xf32>
    %23 = vector.shape_cast %22 : vector<1x1x8x8xf32> to vector<8x8xf32>
    %24 = vector.shape_cast %21 : vector<8x8xf32> to vector<1x1x8x8xf32>
    tpu.vector_store %arg4[%c0_17, %c1, %c0_18, %c0_19], %24 {strides = array<i32>} : memref<1x4x8x8xf32, #tpu.memory_space<vmem>>, vector<1x1x8x8xf32>,
    %25 = vector.extract_strided_slice %7 {offsets = [0, 8], sizes = [8, 8], strides = [1, 1]} : vector<8x32xf32> to vector<8x8xf32>
    %c0_20 = arith.constant 0 : index
    %c1_21 = arith.constant 1 : index
    %c0_22 = arith.constant 0 : index
    %c0_23 = arith.constant 0 : index
    %26 = vector.load %arg5[%c0_20, %c1_21, %c0_22, %c0_23] : memref<1x4x8x8xf32, #tpu.memory_space<vmem>>, vector<1x1x8x8xf32>
    %27 = vector.shape_cast %26 : vector<1x1x8x8xf32> to vector<8x8xf32>
    %28 = vector.shape_cast %25 : vector<8x8xf32> to vector<1x1x8x8xf32>
    tpu.vector_store %arg5[%c0_20, %c1_21, %c0_22, %c0_23], %28 {strides = array<i32>} : memref<1x4x8x8xf32, #tpu.memory_space<vmem>>, vector<1x1x8x8xf32>,
    %29 = vector.extract_strided_slice %8 {offsets = [0, 8], sizes = [8, 8], strides = [1, 1]} : vector<8x32xf32> to vector<8x8xf32>
    %c0_24 = arith.constant 0 : index
    %c1_25 = arith.constant 1 : index
    %c0_26 = arith.constant 0 : index
    %c0_27 = arith.constant 0 : index
    %30 = vector.load %arg6[%c0_24, %c1_25, %c0_26, %c0_27] : memref<1x4x8x8xf32, #tpu.memory_space<vmem>>, vector<1x1x8x8xf32>
    %31 = vector.shape_cast %30 : vector<1x1x8x8xf32> to vector<8x8xf32>
    %32 = vector.shape_cast %29 : vector<8x8xf32> to vector<1x1x8x8xf32>
    tpu.vector_store %arg6[%c0_24, %c1_25, %c0_26, %c0_27], %32 {strides = array<i32>} : memref<1x4x8x8xf32, #tpu.memory_space<vmem>>, vector<1x1x8x8xf32>,
    %33 = vector.extract_strided_slice %6 {offsets = [0, 16], sizes = [8, 8], strides = [1, 1]} : vector<8x32xf32> to vector<8x8xf32>
    %c0_28 = arith.constant 0 : index
    %c2 = arith.constant 2 : index
    %c0_29 = arith.constant 0 : index
    %c0_30 = arith.constant 0 : index
    %34 = vector.load %arg4[%c0_28, %c2, %c0_29, %c0_30] : memref<1x4x8x8xf32, #tpu.memory_space<vmem>>, vector<1x1x8x8xf32>
    %35 = vector.shape_cast %34 : vector<1x1x8x8xf32> to vector<8x8xf32>
    %36 = vector.shape_cast %33 : vector<8x8xf32> to vector<1x1x8x8xf32>
    tpu.vector_store %arg4[%c0_28, %c2, %c0_29, %c0_30], %36 {strides = array<i32>} : memref<1x4x8x8xf32, #tpu.memory_space<vmem>>, vector<1x1x8x8xf32>,
    %37 = vector.extract_strided_slice %7 {offsets = [0, 16], sizes = [8, 8], strides = [1, 1]} : vector<8x32xf32> to vector<8x8xf32>
    %c0_31 = arith.constant 0 : index
    %c2_32 = arith.constant 2 : index
    %c0_33 = arith.constant 0 : index
    %c0_34 = arith.constant 0 : index
    %38 = vector.load %arg5[%c0_31, %c2_32, %c0_33, %c0_34] : memref<1x4x8x8xf32, #tpu.memory_space<vmem>>, vector<1x1x8x8xf32>
    %39 = vector.shape_cast %38 : vector<1x1x8x8xf32> to vector<8x8xf32>
    %40 = vector.shape_cast %37 : vector<8x8xf32> to vector<1x1x8x8xf32>
    tpu.vector_store %arg5[%c0_31, %c2_32, %c0_33, %c0_34], %40 {strides = array<i32>} : memref<1x4x8x8xf32, #tpu.memory_space<vmem>>, vector<1x1x8x8xf32>,
    %41 = vector.extract_strided_slice %8 {offsets = [0, 16], sizes = [8, 8], strides = [1, 1]} : vector<8x32xf32> to vector<8x8xf32>
    %c0_35 = arith.constant 0 : index
    %c2_36 = arith.constant 2 : index
    %c0_37 = arith.constant 0 : index
    %c0_38 = arith.constant 0 : index
    %42 = vector.load %arg6[%c0_35, %c2_36, %c0_37, %c0_38] : memref<1x4x8x8xf32, #tpu.memory_space<vmem>>, vector<1x1x8x8xf32>
    %43 = vector.shape_cast %42 : vector<1x1x8x8xf32> to vector<8x8xf32>
    %44 = vector.shape_cast %41 : vector<8x8xf32> to vector<1x1x8x8xf32>
    tpu.vector_store %arg6[%c0_35, %c2_36, %c0_37, %c0_38], %44 {strides = array<i32>} : memref<1x4x8x8xf32, #tpu.memory_space<vmem>>, vector<1x1x8x8xf32>,
    %45 = vector.extract_strided_slice %6 {offsets = [0, 24], sizes = [8, 8], strides = [1, 1]} : vector<8x32xf32> to vector<8x8xf32>
    %c0_39 = arith.constant 0 : index
    %c3 = arith.constant 3 : index
    %c0_40 = arith.constant 0 : index
    %c0_41 = arith.constant 0 : index
    %46 = vector.load %arg4[%c0_39, %c3, %c0_40, %c0_41] : memref<1x4x8x8xf32, #tpu.memory_space<vmem>>, vector<1x1x8x8xf32>
    %47 = vector.shape_cast %46 : vector<1x1x8x8xf32> to vector<8x8xf32>
    %48 = vector.shape_cast %45 : vector<8x8xf32> to vector<1x1x8x8xf32>
    tpu.vector_store %arg4[%c0_39, %c3, %c0_40, %c0_41], %48 {strides = array<i32>} : memref<1x4x8x8xf32, #tpu.memory_space<vmem>>, vector<1x1x8x8xf32>,
    %49 = vector.extract_strided_slice %7 {offsets = [0, 24], sizes = [8, 8], strides = [1, 1]} : vector<8x32xf32> to vector<8x8xf32>
    %c0_42 = arith.constant 0 : index
    %c3_43 = arith.constant 3 : index
    %c0_44 = arith.constant 0 : index
    %c0_45 = arith.constant 0 : index
    %50 = vector.load %arg5[%c0_42, %c3_43, %c0_44, %c0_45] : memref<1x4x8x8xf32, #tpu.memory_space<vmem>>, vector<1x1x8x8xf32>
    %51 = vector.shape_cast %50 : vector<1x1x8x8xf32> to vector<8x8xf32>
    %52 = vector.shape_cast %49 : vector<8x8xf32> to vector<1x1x8x8xf32>
    tpu.vector_store %arg5[%c0_42, %c3_43, %c0_44, %c0_45], %52 {strides = array<i32>} : memref<1x4x8x8xf32, #tpu.memory_space<vmem>>, vector<1x1x8x8xf32>,
    %53 = vector.extract_strided_slice %8 {offsets = [0, 24], sizes = [8, 8], strides = [1, 1]} : vector<8x32xf32> to vector<8x8xf32>
    %c0_46 = arith.constant 0 : index
    %c3_47 = arith.constant 3 : index
    %c0_48 = arith.constant 0 : index
    %c0_49 = arith.constant 0 : index
    %54 = vector.load %arg6[%c0_46, %c3_47, %c0_48, %c0_49] : memref<1x4x8x8xf32, #tpu.memory_space<vmem>>, vector<1x1x8x8xf32>
    %55 = vector.shape_cast %54 : vector<1x1x8x8xf32> to vector<8x8xf32>
    %56 = vector.shape_cast %53 : vector<8x8xf32> to vector<1x1x8x8xf32>
    tpu.vector_store %arg6[%c0_46, %c3_47, %c0_48, %c0_49], %56 {strides = array<i32>} : memref<1x4x8x8xf32, #tpu.memory_space<vmem>>, vector<1x1x8x8xf32>,
    return
  }
  func.func @transform_0(%arg0: i32, %arg1: i32) -> (i32, i32, i32) {
    %c0_i32 = arith.constant 0 : i32
    %c0_i32_0 = arith.constant 0 : i32
    return %arg0, %arg1, %c0_i32 : i32, i32, i32
  }
  func.func @transform_1(%arg0: i32, %arg1: i32) -> (i32, i32) {
    %c0_i32 = arith.constant 0 : i32
    %c0_i32_0 = arith.constant 0 : i32
    %c0_i32_1 = arith.constant 0 : i32
    return %c0_i32, %c0_i32_0 : i32, i32
  }
  func.func @transform_2(%arg0: i32, %arg1: i32) -> (i32, i32, i32, i32) {
    %c0_i32 = arith.constant 0 : i32
    %c0_i32_0 = arith.constant 0 : i32
    %c0_i32_1 = arith.constant 0 : i32
    return %arg0, %c0_i32, %arg1, %c0_i32_0 : i32, i32, i32, i32
  }
  func.func @transform_3(%arg0: i32, %arg1: i32) -> (i32, i32, i32, i32) {
    %c0_i32 = arith.constant 0 : i32
    %c0_i32_0 = arith.constant 0 : i32
    %c0_i32_1 = arith.constant 0 : i32
    return %arg0, %c0_i32, %arg1, %c0_i32_0 : i32, i32, i32, i32
  }
  func.func @transform_4(%arg0: i32, %arg1: i32) -> (i32, i32, i32, i32) {
    %c0_i32 = arith.constant 0 : i32
    %c0_i32_0 = arith.constant 0 : i32
    %c0_i32_1 = arith.constant 0 : i32
    return %arg0, %c0_i32, %arg1, %c0_i32_0 : i32, i32, i32, i32
  }
}

</mosaic_0001>

<llo_original>
// kernel: tpu_custom_call.1
$region0: #{tpu_custom_call.1}
  #allocation0 [shape = 'u32[]', space=smem, size = 0x4, offset = 0x4, fixed_abs, tag = 'smem constant byte address 0x4 - core index']
  #allocation1 [shape = 'u32[144,128]{1,0:T(1,128)}', space=vmem, size = 0x12000, scoped, tag = 'internal scratch']
  %s0 = inlined_call_operand.hbm [shape: f32[2,8,16], index: 0, kind: input, shape index: {}]
  %s1 = inlined_call_operand.hbm [shape: f32[16,96], index: 1, kind: input, shape index: {}]
  %s2 = inlined_call_operand.hbm [shape: f32[2,4,8,8], index: 2, kind: output, shape index: {0}]
  %s3 = inlined_call_operand.hbm [shape: f32[2,4,8,8], index: 3, kind: output, shape index: {1}]
  %s4 = inlined_call_operand.hbm [shape: f32[2,4,8,8], index: 4, kind: output, shape index: {2}]
  %5 = xla_tuple %s2, %s3, %s4
  %s6 = sld [smem:[#allocation0]]
  $region65: #{tpu_custom_call.1} parent=0
    _
  %s8 = ssub.s32 1, %s6
  %s9 = scalar_select 0, %s8, %s6
  $region1: #{tpu_custom_call.1} parent=0
    #allocation2 [shape = 'u8[8192]{0}', space=vmem, size = 0x2000, scoped, tag = 'input window, operand 0']
    #allocation3 [shape = 's32[2]{0}', space=sflag, size = 0x8, scoped, tag = 'scoped memory for tpu_custom_call.1']
    #allocation4 [shape = 's32[2]{0}', space=sflag, size = 0x8, scoped, tag = 'scoped memory for tpu_custom_call.1']
    #allocation5 [shape = 'u8[8192]{0}', space=vmem, size = 0x2000, scoped, tag = 'input window, operand 1, single buffered']
    #allocation6 [shape = 's32[1]{0}', space=sflag, size = 0x4, scoped, tag = 'scoped memory for tpu_custom_call.1']
    #allocation7 [shape = 'u8[32768]{0}', space=vmem, size = 0x8000, scoped, tag = 'output window, operand 0']
    #allocation8 [shape = 'u8[32768]{0}', space=vmem, size = 0x8000, scoped, tag = 'output window, operand 1']
    #allocation9 [shape = 's32[2]{0}', space=sflag, size = 0x8, scoped, tag = 'scoped memory for tpu_custom_call.1']
    #allocation10 [shape = 'u8[32768]{0}', space=vmem, size = 0x8000, scoped, tag = 'output window, operand 2']
    %10 = vsyncpa [#allocation3], 0
    %s11 = scalar_lea.sflag [#allocation3], 1
    %12 = vsyncpa %s11, 0
    %13 = vsyncpa [#allocation6], 0
    %14 = vsyncpa [#allocation4], 0
    %s15 = scalar_lea.sflag [#allocation4], 1
    %16 = vsyncpa %s15, 0
    %17 = vsyncpa [#allocation9], 0
    %s18 = scalar_lea.sflag [#allocation9], 1
    %19 = vsyncpa %s18, 0
    loop: start=0, step=1, limit=4
    $region2: #{tpu_custom_call.1} parent=1 // loop_pre_header
      _
    $region3: #{tpu_custom_call.1} parent=1 // loop_header
      %s21 = sphi 0, %s25
      %p22 = scmp.ge.s32.totalorder %s21, 4
      %s28 = sphi 0, %s40
      %s29 = sphi 0, %s36
      %s30 = sphi 0, %s28
      %s31 = sphi 0, %s29
      %s32 = sphi 0, %s30
      %s33 = sphi 0, %s31
      %s45 = sphi 0, %s47
      %s48 = sphi 0, %s45
      %s49 = sphi 0, %s48
      %s65 = sphi 0, %s49
      %s69 = sphi 0, %s69
      %s71 = sphi 0, %s69
      %s72 = sphi 0, %s71
      %s86 = sphi 0, %s72
      %s94 = sphi 0, %s96
      %s97 = sphi 0, %s94
      %s98 = sphi 0, %s97
      %s114 = sphi 0, %s98
      %s122 = sphi 0, %s124
      %s125 = sphi 0, %s122
      %s126 = sphi 0, %s125
      %s142 = sphi 0, %s126
      %s150 = sphi 0, %s152
      %s153 = sphi 0, %s150
      %s154 = sphi 0, %s153
      %s170 = sphi 0, %s154
    $region4: #{tpu_custom_call.1} parent=1 // loop_header_branch
      %24 = sbr.rel (%p22) target = $region8
    $region5: #{tpu_custom_call.1} parent=1 // loop_body
      %s26 = ssub.s32 %s21, 1
      %s27 = ssub.s32 %s21, 2
      %s34 = sadd.s32 1, %s29
      %p35 = scmp.ge.s32.totalorder %s34, 1
      %s36 = scalar_select %p35, 0, %s34
      %s37 = sadd.s32 1, %s28
      %s38 = scalar_select %p35, %s37, %s28
      %p39 = scmp.ge.s32.totalorder %s38, 2
      %s40 = scalar_select %p39, 0, %s38
      %s41 = ssub.s32 %s28, %s40
      %s42 = ssub.s32 %s29, %s36
      %s43 = sor.u32 %s41, %s42
      %p44 = scmp.eq.s32.totalorder %s43, 0
      %s46 = sadd.s32 %s45, 1
      %s47 = scalar_select %p44, %s45, %s46
      %p50 = pneg %p44
      %p51 = scmp.eq.s32.totalorder %s21, 1
      %p52 = por %p50, %p51
      %p53 = scmp.ne.s32.totalorder %s45, %s48
      %p54 = scmp.eq.s32.totalorder %s21, 0
      %p55 = por %p53, %p54
      %p56 = scmp.ne.s32.totalorder %s45, %s48
      %p57 = scmp.eq.s32.totalorder %s26, 1
      %p58 = por %p56, %p57
      %p59 = scmp.ne.s32.totalorder %s48, %s49
      %p60 = scmp.eq.s32.totalorder %s26, 0
      %p61 = por %p59, %p60
      %p62 = scmp.ne.s32.totalorder %s48, %s49
      %p63 = scmp.eq.s32.totalorder %s27, 1
      %p64 = por %p62, %p63
      %p66 = scmp.ne.s32.totalorder %s49, %s65
      %p67 = scmp.eq.s32.totalorder %s27, 0
      %p68 = por %p66, %p67
      %s70 = sadd.s32 %s69, 1
      %p73 = scmp.eq.s32.totalorder %s21, 1
      %p74 = scmp.ne.s32.totalorder %s69, %s71
      %p75 = scmp.eq.s32.totalorder %s21, 0
      %p76 = por %p74, %p75
      %p77 = scmp.ne.s32.totalorder %s69, %s71
      %p78 = scmp.eq.s32.totalorder %s26, 1
      %p79 = por %p77, %p78
      %p80 = scmp.ne.s32.totalorder %s71, %s72
      %p81 = scmp.eq.s32.totalorder %s26, 0
      %p82 = por %p80, %p81
      %p83 = scmp.ne.s32.totalorder %s71, %s72
      %p84 = scmp.eq.s32.totalorder %s27, 1
      %p85 = por %p83, %p84
      %p87 = scmp.ne.s32.totalorder %s72, %s86
      %p88 = scmp.eq.s32.totalorder %s27, 0
      %p89 = por %p87, %p88
      %s90 = ssub.s32 %s28, %s40
      %s91 = ssub.s32 %s29, %s36
      %s92 = sor.u32 %s90, %s91
      %p93 = scmp.eq.s32.totalorder %s92, 0
      %s95 = sadd.s32 %s94, 1
      %s96 = scalar_select %p93, %s94, %s95
      %p99 = pneg %p93
      %p100 = scmp.eq.s32.totalorder %s21, 1
      %p101 = por %p99, %p100
      %p102 = scmp.ne.s32.totalorder %s94, %s97
      %p103 = scmp.eq.s32.totalorder %s21, 0
      %p104 = por %p102, %p103
      %p105 = scmp.ne.s32.totalorder %s94, %s97
      %p106 = scmp.eq.s32.totalorder %s26, 1
      %p107 = por %p105, %p106
      %p108 = scmp.ne.s32.totalorder %s97, %s98
      %p109 = scmp.eq.s32.totalorder %s26, 0
      %p110 = por %p108, %p109
      %p111 = scmp.ne.s32.totalorder %s97, %s98
      %p112 = scmp.eq.s32.totalorder %s27, 1
      %p113 = por %p111, %p112
      %p115 = scmp.ne.s32.totalorder %s98, %s114
      %p116 = scmp.eq.s32.totalorder %s27, 0
      %p117 = por %p115, %p116
      %s118 = ssub.s32 %s28, %s40
      %s119 = ssub.s32 %s29, %s36
      %s120 = sor.u32 %s118, %s119
      %p121 = scmp.eq.s32.totalorder %s120, 0
      %s123 = sadd.s32 %s122, 1
      %s124 = scalar_select %p121, %s122, %s123
      %p127 = pneg %p121
      %p128 = scmp.eq.s32.totalorder %s21, 1
      %p129 = por %p127, %p128
      %p130 = scmp.ne.s32.totalorder %s122, %s125
      %p131 = scmp.eq.s32.totalorder %s21, 0
      %p132 = por %p130, %p131
      %p133 = scmp.ne.s32.totalorder %s122, %s125
      %p134 = scmp.eq.s32.totalorder %s26, 1
      %p135 = por %p133, %p134
      %p136 = scmp.ne.s32.totalorder %s125, %s126
      %p137 = scmp.eq.s32.totalorder %s26, 0
      %p138 = por %p136, %p137
      %p139 = scmp.ne.s32.totalorder %s125, %s126
      %p140 = scmp.eq.s32.totalorder %s27, 1
      %p141 = por %p139, %p140
      %p143 = scmp.ne.s32.totalorder %s126, %s142
      %p144 = scmp.eq.s32.totalorder %s27, 0
      %p145 = por %p143, %p144
      %s146 = ssub.s32 %s28, %s40
      %s147 = ssub.s32 %s29, %s36
      %s148 = sor.u32 %s146, %s147
      %p149 = scmp.eq.s32.totalorder %s148, 0
      %s151 = sadd.s32 %s150, 1
      %s152 = scalar_select %p149, %s150, %s151
      %p155 = pneg %p149
      %p156 = scmp.eq.s32.totalorder %s21, 1
      %p157 = por %p155, %p156
      %p158 = scmp.ne.s32.totalorder %s150, %s153
      %p159 = scmp.eq.s32.totalorder %s21, 0
      %p160 = por %p158, %p159
      %p161 = scmp.ne.s32.totalorder %s150, %s153
      %p162 = scmp.eq.s32.totalorder %s26, 1
      %p163 = por %p161, %p162
      %p164 = scmp.ne.s32.totalorder %s153, %s154
      %p165 = scmp.eq.s32.totalorder %s26, 0
      %p166 = por %p164, %p165
      %p167 = scmp.ne.s32.totalorder %s153, %s154
      %p168 = scmp.eq.s32.totalorder %s27, 1
      %p169 = por %p167, %p168
      %p171 = scmp.ne.s32.totalorder %s154, %s170
      %p172 = scmp.eq.s32.totalorder %s27, 0
      %p173 = por %p171, %p172
      %p174 = scmp.le.s32.totalorder 1, %s21
      %p175 = scmp.lt.s32.totalorder %s21, 3
      %p176 = pnand %p174, %p175
      %p177 = pneg %p176
      // Predicated region
      $region9: #{tpu_custom_call.1} parent=5 // pred_check
        _
      $region10: #{tpu_custom_call.1} parent=5 // pred_check_branch
        %179 = sbr.rel (%p176) target = $region12
      $region11: #{tpu_custom_call.1} parent=5 // pred_region
        %s180 = ssub.s32 %s21, 1
        // Predicated region
        $region13: #{tpu_custom_call.1} parent=11 // pred_check
          %p181 = pneg %p82
        $region14: #{tpu_custom_call.1} parent=11 // pred_check_branch
          %183 = sbr.rel (%p181) target = $region16
        $region15: #{tpu_custom_call.1} parent=11 // pred_region
          %s185 = ssub.s32 256, 256
          %186 = vsyncadd [#allocation6], %s185
          %s187 = sshll.u32 [#allocation5], 4
          %s188 = int_to_ptr.vmem [resolvable:$true] %s187
          %193 = dma.hbm_to_vmem [thread:$0]  %s1, 256, %s188, [#allocation6], 128, 128, 8
        $region16: #{tpu_custom_call.1} parent=11 // pred_fallthru
          _
      $region12: #{tpu_custom_call.1} parent=5 // pred_fallthru
        _
      %p194 = scmp.lt.s32.totalorder %s21, 2
      // Predicated region
      $region17: #{tpu_custom_call.1} parent=5 // pred_check
        %p195 = pneg %p194
      $region18: #{tpu_custom_call.1} parent=5 // pred_check_branch
        %197 = sbr.rel (%p195) target = $region20
      $region19: #{tpu_custom_call.1} parent=5 // pred_region
        // Predicated region
        $region21: #{tpu_custom_call.1} parent=19 // pred_check
          %p198 = pneg %p55
        $region22: #{tpu_custom_call.1} parent=19 // pred_check_branch
          %200 = sbr.rel (%p198) target = $region24
        $region23: #{tpu_custom_call.1} parent=19 // pred_region
          %s201 = sand.u32 %s45, 1
          %s202 = scalar_lea.sflag [#allocation3], %s201
          %s203 = sand.u32 %s45, 1
          %s204 = smul.addr %s203, 8
          %s205 = scalar_lea.vmem [#allocation2], %s204
          %s207 = ssub.s32 128, 128
          %208 = vsyncadd %s202, %s207
          %s209 = sadd.s32 %s29, %s28
          %s210 = smul.addr %s209, 128
          %s211 = scalar_lea.hbm %s0, %s210
          %s213 = sshll.u32 %s205, 4
          %s214 = int_to_ptr.vmem [resolvable:$true] %s213
          %216 = dma.hbm_to_vmem [thread:$0]  %s211, 128, %s214, %s202
        $region24: #{tpu_custom_call.1} parent=19 // pred_fallthru
          _
      $region20: #{tpu_custom_call.1} parent=5 // pred_fallthru
        _
      %p217 = scmp.le.s32.totalorder 1, %s21
      %p218 = scmp.lt.s32.totalorder %s21, 3
      %p219 = pnand %p217, %p218
      %p220 = pneg %p219
      // Predicated region
      $region25: #{tpu_custom_call.1} parent=5 // pred_check
        _
      $region26: #{tpu_custom_call.1} parent=5 // pred_check_branch
        %222 = sbr.rel (%p219) target = $region28
      $region27: #{tpu_custom_call.1} parent=5 // pred_region
        %s223 = ssub.s32 %s21, 1
        %s224 = sand.u32 %s48, 1
        %s225 = scalar_lea.sflag [#allocation3], %s224
        %s226 = sand.u32 %s48, 1
        %s227 = smul.addr %s226, 8
        %s228 = scalar_lea.vmem [#allocation2], %s227
        // Predicated region
        $region29: #{tpu_custom_call.1} parent=27 // pred_check
          %p229 = pneg %p61
        $region30: #{tpu_custom_call.1} parent=27 // pred_check_branch
          %231 = sbr.rel (%p229) target = $region32
        $region31: #{tpu_custom_call.1} parent=27 // pred_region
          %232 = dma.done %s225, 128
        $region32: #{tpu_custom_call.1} parent=27 // pred_fallthru
          _
        // Predicated region
        $region33: #{tpu_custom_call.1} parent=27 // pred_check
          %p233 = pneg %p82
        $region34: #{tpu_custom_call.1} parent=27 // pred_check_branch
          %235 = sbr.rel (%p233) target = $region36
        $region35: #{tpu_custom_call.1} parent=27 // pred_region
          %236 = dma.done [#allocation6], 256
        $region36: #{tpu_custom_call.1} parent=27 // pred_fallthru
          _
        %s237 = sand.u32 %s48, 1
        %s238 = scalar_lea.sflag [#allocation3], %s237
        %s239 = sand.u32 %s48, 1
        %s240 = smul.addr %s239, 8
        %s241 = scalar_lea.vmem [#allocation2], %s240
        %p242 = pneg %p61
        %p243 = pneg %p58
        %p244 = pneg %p82
        %p245 = pneg %p79
        %p246 = pneg %p110
        %p247 = pneg %p107
        %s248 = sand.u32 %s97, 1
        %s249 = scalar_lea.sflag [#allocation4], %s248
        %s250 = sand.u32 %s97, 1
        %s251 = smul.addr %s250, 32
        %s252 = scalar_lea.vmem [#allocation7], %s251
        %p253 = pneg %p138
        %p254 = pneg %p135
        %s255 = sand.u32 %s26, 1
        %s256 = scalar_lea.sflag [#allocation9], %s255
        %s257 = sand.u32 %s125, 1
        %s258 = smul.addr %s257, 32
        %s259 = scalar_lea.vmem [#allocation8], %s258
        %p260 = pneg %p166
        %p261 = pneg %p163
        %s262 = sand.u32 %s26, 1
        %s263 = scalar_lea.sflag [#allocation9], %s262
        %s264 = sand.u32 %s153, 1
        %s265 = smul.addr %s264, 32
        %s266 = scalar_lea.vmem [#allocation10], %s265
        %v267 = vld [vmem:[%s228] sm:$0xff]
        %v268 = vld [vmem:[#allocation5] sm:$0xff]
        %v269 = vld [vmem:[#allocation5 + $0x8] sm:$0xff]
        %vm270 = vcmask 130048
        %v272 = vsel %vm270, %v267, 0
        %274 = vmatprep.subr.mxu0 0.0
        %275 = vmatpush1.msra.mxu0 0.0
        %276 = vmatprep.subr.mxu0 0.0
        %277 = vmatpush1.msra.mxu0 0.0
        %278 = vmatprep.subr.mxu0 0.0
        %279 = vmatpush1.msra.mxu0 0.0
        %280 = vmatprep.subr.mxu0 0.0
        %281 = vmatpush1.msra.mxu0 0.0
        %282 = vmatprep.subr.mxu0 0.0
        %283 = vmatpush1.msra.mxu0 0.0
        %284 = vmatprep.subr.mxu0 0.0
        %285 = vmatpush1.msra.mxu0 0.0
        %286 = vmatprep.subr.mxu0 0.0
        %287 = vmatpush1.msra.mxu0 0.0
        %288 = vmatprep.subr.mxu0 0.0
        %289 = vmatpush1.msra.mxu0 0.0
        %290 = vmatprep.subr.mxu0 0.0
        %291 = vmatpush1.msra.mxu0 0.0
        %292 = vmatprep.subr.mxu0 0.0
        %293 = vmatpush1.msra.mxu0 0.0
        %294 = vmatprep.subr.mxu0 0.0
        %295 = vmatpush1.msra.mxu0 0.0
        %296 = vmatprep.subr.mxu0 0.0
        %297 = vmatpush1.msra.mxu0 0.0
        %298 = vmatprep.subr.mxu0 0.0
        %299 = vmatpush1.msra.mxu0 0.0
        %300 = vmatprep.subr.mxu0 0.0
        %301 = vmatpush1.msra.mxu0 0.0
        %302 = vmatprep.subr.mxu0 0.0
        %303 = vmatpush1.msra.mxu0 %v269
        %304 = vmatprep.subr.mxu0 0.0
        %305 = vmatpush1.msra.mxu0 %v268
        %306 = vmatprep.subr.mxu0 0.0
        %307 = vmatpush2.msra.mxu0 0.0
        %308 = vmatprep.subr.mxu0 0.0
        %309 = vmatpush2.msra.mxu0 0.0
        %310 = vmatprep.subr.mxu0 0.0
        %311 = vmatpush2.msra.mxu0 0.0
        %312 = vmatprep.subr.mxu0 0.0
        %313 = vmatpush2.msra.mxu0 0.0
        %314 = vmatprep.subr.mxu0 0.0
        %315 = vmatpush2.msra.mxu0 0.0
        %316 = vmatprep.subr.mxu0 0.0
        %317 = vmatpush2.msra.mxu0 0.0
        %318 = vmatprep.subr.mxu0 0.0
        %319 = vmatpush2.msra.mxu0 0.0
        %320 = vmatprep.subr.mxu0 0.0
        %321 = vmatpush2.msra.mxu0 0.0
        %322 = vmatprep.subr.mxu0 0.0
        %323 = vmatpush2.msra.mxu0 0.0
        %324 = vmatprep.subr.mxu0 0.0
        %325 = vmatpush2.msra.mxu0 0.0
        %326 = vmatprep.subr.mxu0 0.0
        %327 = vmatpush2.msra.mxu0 0.0
        %328 = vmatprep.subr.mxu0 0.0
        %329 = vmatpush2.msra.mxu0 0.0
        %330 = vmatprep.subr.mxu0 0.0
        %331 = vmatpush2.msra.mxu0 0.0
        %332 = vmatprep.subr.mxu0 0.0
        %333 = vmatpush2.msra.mxu0 0.0
        %334 = vmatprep.subr.mxu0 0.0
        %335 = vmatpush2.msra.mxu0 0.0
        %336 = vmatprep.subr.mxu0 0.0
        %337 = vmatpush2.msra.mxu0 0.0
        %338 = vmatprep.mubr.f32.mxu0 0.0
        %339 = vmatmul.mubr.f32.gmra.mxu0 %v272
        %v340 = vpop.f32.mrf.mxu0
        %v341 = vadd.f32 0.0, %v340
        %v342 = vpop.f32.mrf.mxu0
        %343 = vdwg.mxu0
        %v344 = vmul.f32 %v341, 0.35355338
        %vm345 = vcmask 64512
        %346 = vst.msk [vmem:[%s252] sm:$0xff] %vm345, %v344
        %348 = vrot.lane.b32.xlu0 %v341, 96
        %v349 = vpop.permute.xlu0 %348
        %351 = vst.msk [vmem:[%s259] sm:$0xff] %vm345, %v349
        %352 = vrot.lane.b32.xlu0 %v341, 64
        %v353 = vpop.permute.xlu0 %352
        %355 = vst.msk [vmem:[%s266] sm:$0xff] %vm345, %v353
        %357 = vrot.lane.b32.xlu0 %v344, 120
        %v358 = vpop.permute.xlu0 %357
        %s360 = scalar_lea.vmem %s252, 8 [#allocation7]
        %361 = vst.msk [vmem:[%s360] sm:$0xff] %vm345, %v358
        %362 = vrot.lane.b32.xlu0 %v341, 88
        %v363 = vpop.permute.xlu0 %362
        %s365 = scalar_lea.vmem %s259, 8 [#allocation8]
        %366 = vst.msk [vmem:[%s365] sm:$0xff] %vm345, %v363
        %367 = vrot.lane.b32.xlu0 %v341, 56
        %v368 = vpop.permute.xlu0 %367
        %s370 = scalar_lea.vmem %s266, 8 [#allocation10]
        %371 = vst.msk [vmem:[%s370] sm:$0xff] %vm345, %v368
        %372 = vrot.lane.b32.xlu0 %v344, 112
        %v373 = vpop.permute.xlu0 %372
        %s375 = scalar_lea.vmem %s252, 16 [#allocation7]
        %376 = vst.msk [vmem:[%s375] sm:$0xff] %vm345, %v373
        %377 = vrot.lane.b32.xlu0 %v341, 80
        %v378 = vpop.permute.xlu0 %377
        %s380 = scalar_lea.vmem %s259, 16 [#allocation8]
        %381 = vst.msk [vmem:[%s380] sm:$0xff] %vm345, %v378
        %382 = vrot.lane.b32.xlu0 %v341, 48
        %v383 = vpop.permute.xlu0 %382
        %s385 = scalar_lea.vmem %s266, 16 [#allocation10]
        %386 = vst.msk [vmem:[%s385] sm:$0xff] %vm345, %v383
        %387 = vrot.lane.b32.xlu0 %v344, 104
        %v388 = vpop.permute.xlu0 %387
        %s390 = scalar_lea.vmem %s252, 24 [#allocation7]
        %391 = vst.msk [vmem:[%s390] sm:$0xff] %vm345, %v388
        %392 = vrot.lane.b32.xlu0 %v341, 72
        %v393 = vpop.permute.xlu0 %392
        %s395 = scalar_lea.vmem %s259, 24 [#allocation8]
        %396 = vst.msk [vmem:[%s395] sm:$0xff] %vm345, %v393
        %397 = vrot.lane.b32.xlu0 %v341, 40
        %v398 = vpop.permute.xlu0 %397
        %s400 = scalar_lea.vmem %s266, 24 [#allocation10]
        %401 = vst.msk [vmem:[%s400] sm:$0xff] %vm345, %v398
        %s402 = sand.u32 %s97, 1
        %s403 = scalar_lea.sflag [#allocation4], %s402
        %s404 = sand.u32 %s97, 1
        %s405 = smul.addr %s404, 32
        %s406 = scalar_lea.vmem [#allocation7], %s405
        %s407 = sand.u32 %s26, 1
        %s408 = scalar_lea.sflag [#allocation9], %s407
        %s409 = sand.u32 %s125, 1
        %s410 = smul.addr %s409, 32
        %s411 = scalar_lea.vmem [#allocation8], %s410
        %s412 = sand.u32 %s26, 1
        %s413 = scalar_lea.sflag [#allocation9], %s412
        %s414 = sand.u32 %s153, 1
        %s415 = smul.addr %s414, 32
        %s416 = scalar_lea.vmem [#allocation10], %s415
        // Predicated region
        $region37: #{tpu_custom_call.1} parent=27 // pred_check
          %p417 = pneg %p107
        $region38: #{tpu_custom_call.1} parent=27 // pred_check_branch
          %419 = sbr.rel (%p417) target = $region40
        $region39: #{tpu_custom_call.1} parent=27 // pred_region
          %s421 = ssub.s32 512, 512
          %422 = vsyncadd %s403, %s421
          %s423 = smul.addr %s30, 4
          %s424 = sadd.s32 %s31, %s423
          %s425 = smul.addr %s424, 128
          %s426 = scalar_lea.hbm %s2, %s425
          %s427 = sshll.u32 %s406, 4
          %s428 = int_to_ptr.vmem [resolvable:$true] %s427
          %433 = dma.vmem_to_hbm [thread:$0]  %s428, 512, %s426, %s403, 128, 128, 8
        $region40: #{tpu_custom_call.1} parent=27 // pred_fallthru
          _
        // Predicated region
        $region41: #{tpu_custom_call.1} parent=27 // pred_check
          %p434 = pneg %p135
        $region42: #{tpu_custom_call.1} parent=27 // pred_check_branch
          %436 = sbr.rel (%p434) target = $region44
        $region43: #{tpu_custom_call.1} parent=27 // pred_region
          %s438 = ssub.s32 512, 512
          %439 = vsyncadd %s408, %s438
          %s440 = smul.addr %s30, 4
          %s441 = sadd.s32 %s31, %s440
          %s442 = smul.addr %s441, 128
          %s443 = scalar_lea.hbm %s3, %s442
          %s444 = sshll.u32 %s411, 4
          %s445 = int_to_ptr.vmem [resolvable:$true] %s444
          %450 = dma.vmem_to_hbm [thread:$0]  %s445, 512, %s443, %s408, 128, 128, 8
        $region44: #{tpu_custom_call.1} parent=27 // pred_fallthru
          _
        // Predicated region
        $region45: #{tpu_custom_call.1} parent=27 // pred_check
          %p451 = pneg %p163
        $region46: #{tpu_custom_call.1} parent=27 // pred_check_branch
          %453 = sbr.rel (%p451) target = $region48
        $region47: #{tpu_custom_call.1} parent=27 // pred_region
          %s455 = ssub.s32 512, 512
          %456 = vsyncadd %s413, %s455
          %s457 = smul.addr %s30, 4
          %s458 = sadd.s32 %s31, %s457
          %s459 = smul.addr %s458, 128
          %s460 = scalar_lea.hbm %s4, %s459
          %s461 = sshll.u32 %s416, 4
          %s462 = int_to_ptr.vmem [resolvable:$true] %s461
          %467 = dma.vmem_to_hbm [thread:$0]  %s462, 512, %s460, %s413, 128, 128, 8
        $region48: #{tpu_custom_call.1} parent=27 // pred_fallthru
          _
      $region28: #{tpu_custom_call.1} parent=5 // pred_fallthru
        _
      %p468 = scmp.le.s32.totalorder 2, %s21
      // Predicated region
      $region49: #{tpu_custom_call.1} parent=5 // pred_check
        %p469 = pneg %p468
      $region50: #{tpu_custom_call.1} parent=5 // pred_check_branch
        %471 = sbr.rel (%p469) target = $region52
      $region51: #{tpu_custom_call.1} parent=5 // pred_region
        %s472 = ssub.s32 %s21, 2
        // Predicated region
        $region53: #{tpu_custom_call.1} parent=51 // pred_check
          %p473 = pneg %p113
        $region54: #{tpu_custom_call.1} parent=51 // pred_check_branch
          %475 = sbr.rel (%p473) target = $region56
        $region55: #{tpu_custom_call.1} parent=51 // pred_region
          %s476 = sand.u32 %s98, 1
          %s477 = scalar_lea.sflag [#allocation4], %s476
          %s478 = sand.u32 %s98, 1
          %s479 = smul.addr %s478, 32
          %s480 = scalar_lea.vmem [#allocation7], %s479
          %481 = dma.done %s477, 512
        $region56: #{tpu_custom_call.1} parent=51 // pred_fallthru
          _
        // Predicated region
        $region57: #{tpu_custom_call.1} parent=51 // pred_check
          %p482 = pneg %p141
        $region58: #{tpu_custom_call.1} parent=51 // pred_check_branch
          %484 = sbr.rel (%p482) target = $region60
        $region59: #{tpu_custom_call.1} parent=51 // pred_region
          %s485 = sand.u32 %s27, 1
          %s486 = scalar_lea.sflag [#allocation9], %s485
          %s487 = sand.u32 %s126, 1
          %s488 = smul.addr %s487, 32
          %s489 = scalar_lea.vmem [#allocation8], %s488
          %490 = dma.done %s486, 512
        $region60: #{tpu_custom_call.1} parent=51 // pred_fallthru
          _
        // Predicated region
        $region61: #{tpu_custom_call.1} parent=51 // pred_check
          %p491 = pneg %p169
        $region62: #{tpu_custom_call.1} parent=51 // pred_check_branch
          %493 = sbr.rel (%p491) target = $region64
        $region63: #{tpu_custom_call.1} parent=51 // pred_region
          %s494 = sand.u32 %s27, 1
          %s495 = scalar_lea.sflag [#allocation9], %s494
          %s496 = sand.u32 %s154, 1
          %s497 = smul.addr %s496, 32
          %s498 = scalar_lea.vmem [#allocation10], %s497
          %499 = dma.done %s495, 512
        $region64: #{tpu_custom_call.1} parent=51 // pred_fallthru
          _
      $region52: #{tpu_custom_call.1} parent=5 // pred_fallthru
        _
    $region6: #{tpu_custom_call.1} parent=1 // loop_footer
      %s25 = sadd.s32 1, %s21
    $region7: #{tpu_custom_call.1} parent=1 // loop_footer_branch
      %20 = sbr.rel target = $region3
    $region8: #{tpu_custom_call.1} parent=1 // loop_exit
      _
    %500 = vsyncpa [#allocation3], 1
    %s501 = scalar_lea.sflag [#allocation3], 1
    %502 = vsyncpa %s501, 1
    %503 = vsyncpa [#allocation6], 1
    %504 = vsyncpa [#allocation4], 1
    %s505 = scalar_lea.sflag [#allocation4], 1
    %506 = vsyncpa %s505, 1
    %507 = vsyncpa [#allocation9], 1
    %s508 = scalar_lea.sflag [#allocation9], 1
    %509 = vsyncpa %s508, 1

</llo_original>
